<compile_context>
chip_gen: v7x
topology: tpu7x:2x2x1
jax: 0.10.0
libtpu: 0.0.40
codegen_flags: <defaults>
</compile_context>

<pallas_src>
import functools

import jax
import jax.numpy as jnp
from jax.experimental import pallas as pl
from jax.experimental.pallas import tpu as pltpu

_EPS = 1e-5  # torch.nn.LayerNorm default


# ----------------------------- small helpers --------------------------------
def _round_up(a, b):
    return ((a + b - 1) // b) * b


def _cdiv(a, b):
    return (a + b - 1) // b


def _pick_row_tile(rows, tile_rows):
    """Row tile: <= tile_rows, multiple of 8 sublanes, and small enough that
    the 'parallel' row grid has >= 2 programs (v7x has 2 TensorCores)."""
    half = _round_up(_cdiv(rows, 2), 8)
    return max(8, min(tile_rows, half))


@functools.lru_cache(maxsize=None)
def _vmem_limit_bytes():
    cap = 64 * 1024 * 1024  # safe fallback (v7x physical per-TC VMEM)
    try:
        cap = int(pltpu.get_tpu_info().vmem_capacity_bytes)
    except Exception:
        pass
    # ~3/4 of physical: 48 MiB on v7x (64 MiB), 96 MiB on v5e/v6e (128 MiB).
    return int(cap * 3 // 4)


def _const_block_spec(block_shape, index_map):
    """Spec for an operand whose block index never changes: single-buffer it
    so a large weight is not held twice in VMEM."""
    try:
        return pl.BlockSpec(block_shape, index_map, pipeline_mode=pl.Buffered(1))
    except Exception:  # older jax without pipeline_mode / Buffered
        return pl.BlockSpec(block_shape, index_map)


# --------------------- fused PreNorm(LayerNorm) + Linear ---------------------
def _prenorm_linear_kernel(x_ref, wt_ref, bias_ref, o_ref):
    # x_ref: (TR, D_in) f32; wt_ref: (D_in, TN) bf16 (gamma pre-folded);
    # bias_ref: (1, TN) f32 (beta pre-folded).
    x = x_ref[...].astype(jnp.float32)
    mean = jnp.mean(x, axis=-1, keepdims=True)              # XLU row-reduce
    centered = x - mean
    var = jnp.mean(centered * centered, axis=-1, keepdims=True)
    inv = jax.lax.rsqrt(var + _EPS)                          # EUP
    y = centered * inv                                       # f32 LN stats
    acc = jnp.dot(y.astype(wt_ref.dtype), wt_ref[...],       # bf16 MXU, f32 acc
                  preferred_element_type=jnp.float32)
    acc = acc + bias_ref[...].astype(jnp.float32)
    o_ref[...] = acc.astype(o_ref.dtype)


def _linear_kernel(x_ref, wt_ref, b_ref, o_ref):
    acc = jnp.dot(x_ref[...].astype(wt_ref.dtype), wt_ref[...],
                  preferred_element_type=jnp.float32)
    o_ref[...] = (acc + b_ref[...].astype(jnp.float32)).astype(o_ref.dtype)


def _call_row_matmul(kernel, x2, wt, bias2, out_dtype, tile_rows, tile_out):
    """Shared grid/spec plumbing: grid = (d_out tiles, row tiles), no padding,
    exact out_shape, single-buffered weight when it is grid-constant."""
    rows, d_in = x2.shape
    d_out = wt.shape[-1]

    tr = _pick_row_tile(rows, tile_rows)
    tn = d_out if d_out <= tile_out else tile_out   # lane-dense (mult of 128)
    n_i = _cdiv(rows, tr)
    n_j = _cdiv(d_out, tn)
    const_w = (n_j == 1)

    if const_w:
        wt_spec = _const_block_spec((d_in, tn), lambda j, i: (0, j))
        b_spec = _const_block_spec((1, tn), lambda j, i: (0, j))
    else:
        wt_spec = pl.BlockSpec((d_in, tn), lambda j, i: (0, j))
        b_spec = pl.BlockSpec((1, tn), lambda j, i: (0, j))

    return pl.pallas_call(
        kernel,
        out_shape=jax.ShapeDtypeStruct((rows, d_out), out_dtype),
        grid_spec=pltpu.PrefetchScalarGridSpec(
            num_scalar_prefetch=0,
            grid=(n_j, n_i),   # d_out outer: weight block stays put over row sweep
            in_specs=[
                pl.BlockSpec((tr, d_in), lambda j, i: (i, 0)),
                wt_spec,
                b_spec,
            ],
            out_specs=pl.BlockSpec((tr, tn), lambda j, i: (i, j)),
        ),
        compiler_params=pltpu.CompilerParams(
            dimension_semantics=("parallel", "parallel"),
            vmem_limit_bytes=_vmem_limit_bytes()),
    )(x2, wt, bias2)


def prenorm_linear_pallas(x, wt_folded, bias_folded, *, tile_rows=512,
                          tile_out=1024):
    """fn(LayerNorm(x)) with fn = Linear, LN fused into the matmul kernel.
    `wt_folded` is (D_in, D_out) with gamma folded in (bf16); `bias_folded`
    is (D_out,) f32 with beta folded in."""
    orig_shape = x.shape
    d_in = orig_shape[-1]
    d_out = wt_folded.shape[-1]
    x2 = x.reshape(-1, d_in)
    bias2 = jnp.asarray(bias_folded, jnp.float32).reshape(1, d_out)
    out = _call_row_matmul(_prenorm_linear_kernel, x2, wt_folded, bias2,
                           x.dtype, tile_rows, tile_out)
    return out.reshape(orig_shape[:-1] + (d_out,))


def linear_pallas(x, wt, bias_f32, *, tile_rows=512, tile_out=1024):
    """y = x @ wt + bias with wt already pre-transposed (D_in, D_out), bf16."""
    orig_shape = x.shape
    d_in = orig_shape[-1]
    d_out = wt.shape[-1]
    x2 = x.reshape(-1, d_in)
    bias2 = jnp.asarray(bias_f32, jnp.float32).reshape(1, d_out)
    out = _call_row_matmul(_linear_kernel, x2, wt, bias2, x.dtype,
                           tile_rows, tile_out)
    return out.reshape(orig_shape[:-1] + (d_out,))


# ------------------ standalone LayerNorm (generic fn fallback) ---------------
def _layernorm_kernel(x_ref, g_ref, b_ref, o_ref):
    x = x_ref[...].astype(jnp.float32)
    mean = jnp.mean(x, axis=-1, keepdims=True)
    centered = x - mean
    var = jnp.mean(centered * centered, axis=-1, keepdims=True)
    inv = jax.lax.rsqrt(var + _EPS)
    y = centered * inv
    y = y * g_ref[...].astype(jnp.float32) + b_ref[...].astype(jnp.float32)
    o_ref[...] = y.astype(o_ref.dtype)


def layernorm_pallas(x, gamma, beta, *, tile_rows=512):
    orig_shape = x.shape
    d = orig_shape[-1]
    x2 = x.reshape(-1, d)
    rows = x2.shape[0]
    tr = _pick_row_tile(rows, tile_rows)
    n_i = _cdiv(rows, tr)

    g2 = jnp.asarray(gamma, jnp.float32).reshape(1, d)
    b2 = jnp.asarray(beta, jnp.float32).reshape(1, d)

    out = pl.pallas_call(
        _layernorm_kernel,
        out_shape=jax.ShapeDtypeStruct((rows, d), x.dtype),
        grid_spec=pltpu.PrefetchScalarGridSpec(
            num_scalar_prefetch=0,
            grid=(n_i,),
            in_specs=[
                pl.BlockSpec((tr, d), lambda i: (i, 0)),
                _const_block_spec((1, d), lambda i: (0, 0)),
                _const_block_spec((1, d), lambda i: (0, 0)),
            ],
            out_specs=pl.BlockSpec((tr, d), lambda i: (i, 0)),
        ),
        compiler_params=pltpu.CompilerParams(
            dimension_semantics=("parallel",),
            vmem_limit_bytes=_vmem_limit_bytes()),
    )(x2, g2, b2)
    return out.reshape(orig_shape)


# --------------------------------- modules -----------------------------------
class LinearPallas:
    """torch.nn.Linear equivalent.  Weight is pre-transposed and stored in
    bf16 once at init (the MXU operand dtype)."""

    def __init__(self, weight, bias):
        self.weight = jnp.asarray(weight, jnp.float32)   # (D_out, D_in)
        self.bias = jnp.asarray(bias, jnp.float32)       # (D_out,)
        self.wt = self.weight.T.astype(jnp.bfloat16)     # (D_in, D_out), bf16
        self.bias_f32 = self.bias

    def __call__(self, x):
        return linear_pallas(x, self.wt, self.bias_f32)


class PreNormPallas:
    """JAX/Pallas equivalent of the PyTorch PreNorm(dim, fn) module."""

    def __init__(self, dim, fn, gamma=None, beta=None):
        self.dim = dim
        self.fn = fn
        # torch.nn.LayerNorm init: weight=1, bias=0 (overridable for tests).
        self.gamma = (jnp.ones((dim,), jnp.float32) if gamma is None
                      else jnp.asarray(gamma, jnp.float32))
        self.beta = (jnp.zeros((dim,), jnp.float32) if beta is None
                     else jnp.asarray(beta, jnp.float32))

        # Hot path prep (once, not per call): fold gamma/beta into the Linear.
        self._fused_wt = None
        self._fused_bias = None
        if isinstance(fn, LinearPallas):
            wt_f32 = fn.weight.T                                  # (D_in, D_out)
            self._fused_wt = (self.gamma[:, None] * wt_f32).astype(jnp.bfloat16)
            self._fused_bias = fn.bias + self.beta @ wt_f32       # (D_out,) f32

    def __call__(self, x, **kwargs):
        if self._fused_wt is not None and not kwargs:
            # Hot path: LayerNorm fused into the matmul (normalized
            # intermediate never round-trips through HBM).
            return prenorm_linear_pallas(x, self._fused_wt, self._fused_bias)
        # Generic `fn`: LayerNorm kernel, then the user-supplied callable.
        # TODO(synk): arbitrary `fn` bodies cannot be fused in general.
        return self.fn(layernorm_pallas(x, self.gamma, self.beta), **kwargs)


# ------------------------------- references ----------------------------------
def _ln_ref(x, gamma, beta):
    mean = jnp.mean(x, axis=-1, keepdims=True)
    var = jnp.mean((x - mean) ** 2, axis=-1, keepdims=True)
    x_hat = (x - mean) * jax.lax.rsqrt(var + _EPS)
    return x_hat, x_hat * gamma + beta


def _fused_ref_bf16(x, wt_folded_bf16, bias_folded):
    """Mirrors the kernel's precision contract (bf16 MXU operands, f32 acc)."""
    x_hat, _ = _ln_ref(x, 1.0, 0.0)   # gamma/beta already folded into wt/bias
    y = jnp.dot(x_hat.reshape(-1, x.shape[-1]).astype(wt_folded_bf16.dtype),
                wt_folded_bf16, preferred_element_type=jnp.float32)
    y = y + bias_folded
    return y.reshape(x.shape[:-1] + (wt_folded_bf16.shape[-1],)).astype(x.dtype)


def _fused_ref_f32(x, gamma, beta, w, b):
    _, x_aff = _ln_ref(x, gamma, beta)
    return x_aff @ w.T + b


# ----------------------------------- main ------------------------------------
if __name__ == "__main__":
    B, N, D_IN, D_OUT = 2, 8, 128, 256   # lane-dense last dims (mult. of 128)

    key = jax.random.PRNGKey(0)
    kx, kw, kb, kg, kbe, kr = jax.random.split(key, 6)
    x = jax.random.normal(kx, (B, N, D_IN), dtype=jnp.float32)

    w = jax.random.normal(kw, (D_OUT, D_IN), dtype=jnp.float32) * 0.02
    b = jax.random.normal(kb, (D_OUT,), dtype=jnp.float32) * 0.02
    gamma = 1.0 + 0.1 * jax.random.normal(kg, (D_IN,), dtype=jnp.float32)
    beta = 0.1 * jax.random.normal(kbe, (D_IN,), dtype=jnp.float32)

    prenorm = PreNormPallas(D_IN, LinearPallas(w, b), gamma=gamma, beta=beta)

    # Fused hot path.
    out = jax.block_until_ready(prenorm(x))
    assert out.shape == (B, N, D_OUT)
    ref_bf16 = _fused_ref_bf16(x, prenorm._fused_wt, prenorm._fused_bias)
    assert jnp.allclose(out, ref_bf16, atol=1e-3, rtol=1e-2), "fused mismatch (bf16 contract)"
    ref_f32 = _fused_ref_f32(x, gamma, beta, w, b)
    assert jnp.allclose(out, ref_f32, atol=2e-2, rtol=5e-2), "fused mismatch (f32 semantics)"

    # Ragged row count (rows not a multiple of 8 / of the tile): partial block
    # is masked by Pallas, no host-side pad/slice.
    x_r = jax.random.normal(kr, (2, 5, D_IN), dtype=jnp.float32)
    out_r = jax.block_until_ready(prenorm(x_r))
    assert out_r.shape == (2, 5, D_OUT)
    ref_r = _fused_ref_bf16(x_r, prenorm._fused_wt, prenorm._fused_bias)
    assert jnp.allclose(out_r, ref_r, atol=1e-3, rtol=1e-2), "ragged mismatch"

    # Standalone LayerNorm kernel (generic-fn fallback path), f32 throughout.
    ln = jax.block_until_ready(layernorm_pallas(x, gamma, beta))
    _, ln_ref = _ln_ref(x, gamma, beta)
    assert jnp.allclose(ln, ln_ref, atol=1e-5, rtol=1e-5), "LayerNorm mismatch"

    # Generic-fn fallback through PreNormPallas.
    prenorm_generic = PreNormPallas(D_IN, lambda t: 2.0 * t, gamma=gamma, beta=beta)
    out_g = jax.block_until_ready(prenorm_generic(x))
    assert jnp.allclose(out_g, 2.0 * ln_ref, atol=1e-5, rtol=1e-5), "generic-fn mismatch"

    # Unfused Linear kernel (used when fn is called standalone).
    lin = prenorm.fn
    out_lin = jax.block_until_ready(lin(x))
    lin_ref = (jnp.dot(x.reshape(-1, D_IN).astype(jnp.bfloat16), lin.wt,
                       preferred_element_type=jnp.float32) + b)
    lin_ref = lin_ref.reshape(B, N, D_OUT).astype(x.dtype)
    assert jnp.allclose(out_lin, lin_ref, atol=1e-3, rtol=1e-2), "linear mismatch"

    print("KERNEL_OK")
</pallas_src>

<mosaic_0001>
module attributes {stable_mosaic.version = 11 : i64} {
  func.func @_prenorm_linear_kernel(%arg0: i32, %arg1: i32, %arg2: memref<8x128xf32, #tpu.memory_space<vmem>>, %arg3: memref<128x256xbf16, #tpu.memory_space<vmem>>, %arg4: memref<1x256xf32, #tpu.memory_space<vmem>>, %arg5: memref<8x256xf32, #tpu.memory_space<vmem>>) attributes {dimension_semantics = [#tpu.dimension_semantics<parallel>, #tpu.dimension_semantics<parallel>], iteration_bounds = array<i64: 1, 2>, scalar_prefetch = 0 : i64, scratch_operands = 0 : i64, tpu.core_type = #tpu.core_type<tc>, window_params = [{transform_indices = @transform_0, window_bounds = array<i64: 8, 128>}, {pipeline_mode = #tpu.pipeline_mode<synchronous>, transform_indices = @transform_1, window_bounds = array<i64: 128, 256>}, {pipeline_mode = #tpu.pipeline_mode<synchronous>, transform_indices = @transform_2, window_bounds = array<i64: 1, 256>}, {transform_indices = @transform_3, window_bounds = array<i64: 8, 256>}]} {
    %c0 = arith.constant 0 : index
    %c0_0 = arith.constant 0 : index
    %0 = vector.load %arg2[%c0, %c0_0] : memref<8x128xf32, #tpu.memory_space<vmem>>, vector<8x128xf32>
    %cst = arith.constant dense<0.000000e+00> : vector<8xf32>
    %1 = vector.multi_reduction <add>, %0, %cst [1] : vector<8x128xf32> to vector<8xf32>
    %2 = vector.shape_cast %1 : vector<8xf32> to vector<8x1xf32>
    %cst_1 = arith.constant 1.280000e+02 : f32
    %3 = vector.broadcast %cst_1 : f32 to vector<8x1xf32>
    %4 = arith.divf %2, %3 : vector<8x1xf32>
    %5 = vector.broadcast %4 : vector<8x1xf32> to vector<8x128xf32>
    %6 = arith.subf %0, %5 : vector<8x128xf32>
    %7 = arith.mulf %6, %6 : vector<8x128xf32>
    %cst_2 = arith.constant dense<0.000000e+00> : vector<8xf32>
    %8 = vector.multi_reduction <add>, %7, %cst_2 [1] : vector<8x128xf32> to vector<8xf32>
    %9 = vector.shape_cast %8 : vector<8xf32> to vector<8x1xf32>
    %cst_3 = arith.constant 1.280000e+02 : f32
    %10 = vector.broadcast %cst_3 : f32 to vector<8x1xf32>
    %11 = arith.divf %9, %10 : vector<8x1xf32>
    %cst_4 = arith.constant 9.99999974E-6 : f32
    %12 = vector.broadcast %cst_4 : f32 to vector<8x1xf32>
    %13 = arith.addf %11, %12 : vector<8x1xf32>
    %14 = math.rsqrt %13 : vector<8x1xf32>
    %15 = vector.broadcast %14 : vector<8x1xf32> to vector<8x128xf32>
    %16 = arith.mulf %6, %15 : vector<8x128xf32>
    %17 = arith.truncf %16 : vector<8x128xf32> to vector<8x128xbf16>
    %c0_5 = arith.constant 0 : index
    %c0_6 = arith.constant 0 : index
    %18 = vector.load %arg3[%c0_5, %c0_6] : memref<128x256xbf16, #tpu.memory_space<vmem>>, vector<128x256xbf16>
    %cst_7 = arith.constant dense<0.000000e+00> : vector<8x256xf32>
    %19 = tpu.matmul %17, %18, %cst_7 {dimension_numbers = #tpu.dot_dimension_numbers<[1], [0], [0], [1], [0, 0, 1, 1], [], []>} : vector<8x128xbf16>, vector<128x256xbf16>, vector<8x256xf32> -> vector<8x256xf32>
    %c0_8 = arith.constant 0 : index
    %c0_9 = arith.constant 0 : index
    %20 = vector.load %arg4[%c0_8, %c0_9] : memref<1x256xf32, #tpu.memory_space<vmem>>, vector<1x256xf32>
    %21 = vector.broadcast %20 : vector<1x256xf32> to vector<8x256xf32>
    %22 = arith.addf %19, %21 : vector<8x256xf32>
    %c0_10 = arith.constant 0 : index
    %c0_11 = arith.constant 0 : index
    %23 = vector.load %arg5[%c0_10, %c0_11] : memref<8x256xf32, #tpu.memory_space<vmem>>, vector<8x256xf32>
    tpu.vector_store %arg5[%c0_10, %c0_11], %22 {strides = array<i32>} : memref<8x256xf32, #tpu.memory_space<vmem>>, vector<8x256xf32>,
    return
  }
  func.func @transform_0(%arg0: i32, %arg1: i32) -> (i32, i32) {
    %c0_i32 = arith.constant 0 : i32
    %c0_i32_0 = arith.constant 0 : i32
    return %arg1, %c0_i32 : i32, i32
  }
  func.func @transform_1(%arg0: i32, %arg1: i32) -> (i32, i32) {
    %c0_i32 = arith.constant 0 : i32
    %c0_i32_0 = arith.constant 0 : i32
    return %c0_i32, %arg0 : i32, i32
  }
  func.func @transform_2(%arg0: i32, %arg1: i32) -> (i32, i32) {
    %c0_i32 = arith.constant 0 : i32
    %c0_i32_0 = arith.constant 0 : i32
    return %c0_i32, %arg0 : i32, i32
  }
  func.func @transform_3(%arg0: i32, %arg1: i32) -> (i32, i32) {
    %c0_i32 = arith.constant 0 : i32
    return %arg1, %arg0 : i32, i32
  }
}

</mosaic_0001>

<llo_original>
// kernel: tpu_custom_call.1
$region0: #{tpu_custom_call.1}
  #allocation0 [shape = 'u32[]', space=smem, size = 0x4, offset = 0x4, fixed_abs, tag = 'smem constant byte address 0x4 - core index']
  #allocation1 [shape = 'u32[144,128]{1,0:T(1,128)}', space=vmem, size = 0x12000, scoped, tag = 'internal scratch']
  %s0 = inlined_call_operand.hbm [shape: f32[16,128], index: 0, kind: input, shape index: {}]
  %s1 = inlined_call_operand.hbm [shape: bf16[128,256], index: 1, kind: input, shape index: {}]
  %s2 = inlined_call_operand.vmem [shape: f32[1,256], index: 2, kind: input, shape index: {}]
  %s3 = inlined_call_operand.hbm [shape: f32[16,256], index: 3, kind: output, shape index: {}]
  %s4 = sld [smem:[#allocation0]]
  $region53: #{tpu_custom_call.1} parent=0
    _
  %s6 = ssub.s32 1, %s4
  %s7 = scalar_select 0, %s6, %s4
  $region1: #{tpu_custom_call.1} parent=0
    #allocation2 [shape = 'u8[8192]{0}', space=vmem, size = 0x2000, scoped, tag = 'input window, operand 0']
    #allocation3 [shape = 's32[2]{0}', space=sflag, size = 0x8, scoped, tag = 'scoped memory for tpu_custom_call.1']
    #allocation4 [shape = 's32[2]{0}', space=sflag, size = 0x8, scoped, tag = 'scoped memory for tpu_custom_call.1']
    #allocation5 [shape = 'u8[65536]{0}', space=vmem, size = 0x10000, scoped, tag = 'input window, operand 1, single buffered']
    #allocation6 [shape = 's32[1]{0}', space=sflag, size = 0x4, scoped, tag = 'scoped memory for tpu_custom_call.1']
    #allocation7 [shape = 'u8[16384]{0}', space=vmem, size = 0x4000, scoped, tag = 'output window, operand 0']
    %8 = vsyncpa [#allocation3], 0
    %s9 = scalar_lea.sflag [#allocation3], 1
    %10 = vsyncpa %s9, 0
    %11 = vsyncpa [#allocation6], 0
    %12 = vsyncpa [#allocation4], 0
    %s13 = scalar_lea.sflag [#allocation4], 1
    %14 = vsyncpa %s13, 0
    loop: start=0, step=1, limit=4
    $region2: #{tpu_custom_call.1} parent=1 // loop_pre_header
      _
    $region3: #{tpu_custom_call.1} parent=1 // loop_header
      %s16 = sphi 0, %s20
      %p17 = scmp.ge.s32.totalorder %s16, 4
      %s23 = sphi 0, %s35
      %s24 = sphi 0, %s31
      %s25 = sphi 0, %s23
      %s26 = sphi 0, %s24
      %s27 = sphi 0, %s25
      %s28 = sphi 0, %s26
      %s38 = sphi 0, %s40
      %s41 = sphi 0, %s38
      %s42 = sphi 0, %s41
      %s58 = sphi 0, %s42
      %s64 = sphi 0, %s66
      %s67 = sphi 0, %s64
      %s68 = sphi 0, %s67
      %s84 = sphi 0, %s68
      %s90 = sphi 0, %s92
      %s93 = sphi 0, %s90
      %s94 = sphi 0, %s93
      %s110 = sphi 0, %s94
      %s118 = sphi 0, %s120
      %s121 = sphi 0, %s118
      %s122 = sphi 0, %s121
      %s138 = sphi 0, %s122
    $region4: #{tpu_custom_call.1} parent=1 // loop_header_branch
      %19 = sbr.rel (%p17) target = $region8
    $region5: #{tpu_custom_call.1} parent=1 // loop_body
      %s21 = ssub.s32 %s16, 1
      %s22 = ssub.s32 %s16, 2
      %s29 = sadd.s32 1, %s24
      %p30 = scmp.ge.s32.totalorder %s29, 2
      %s31 = scalar_select %p30, 0, %s29
      %s32 = sadd.s32 1, %s23
      %s33 = scalar_select %p30, %s32, %s23
      %p34 = scmp.ge.s32.totalorder %s33, 1
      %s35 = scalar_select %p34, 0, %s33
      %s36 = ssub.s32 %s24, %s31
      %p37 = scmp.eq.s32.totalorder %s36, 0
      %s39 = sadd.s32 %s38, 1
      %s40 = scalar_select %p37, %s38, %s39
      %p43 = pneg %p37
      %p44 = scmp.eq.s32.totalorder %s16, 1
      %p45 = por %p43, %p44
      %p46 = scmp.ne.s32.totalorder %s38, %s41
      %p47 = scmp.eq.s32.totalorder %s16, 0
      %p48 = por %p46, %p47
      %p49 = scmp.ne.s32.totalorder %s38, %s41
      %p50 = scmp.eq.s32.totalorder %s21, 1
      %p51 = por %p49, %p50
      %p52 = scmp.ne.s32.totalorder %s41, %s42
      %p53 = scmp.eq.s32.totalorder %s21, 0
      %p54 = por %p52, %p53
      %p55 = scmp.ne.s32.totalorder %s41, %s42
      %p56 = scmp.eq.s32.totalorder %s22, 1
      %p57 = por %p55, %p56
      %p59 = scmp.ne.s32.totalorder %s42, %s58
      %p60 = scmp.eq.s32.totalorder %s22, 0
      %p61 = por %p59, %p60
      %s62 = ssub.s32 %s23, %s35
      %p63 = scmp.eq.s32.totalorder %s62, 0
      %s65 = sadd.s32 %s64, 1
      %s66 = scalar_select %p63, %s64, %s65
      %p69 = pneg %p63
      %p70 = scmp.eq.s32.totalorder %s16, 1
      %p71 = por %p69, %p70
      %p72 = scmp.ne.s32.totalorder %s64, %s67
      %p73 = scmp.eq.s32.totalorder %s16, 0
      %p74 = por %p72, %p73
      %p75 = scmp.ne.s32.totalorder %s64, %s67
      %p76 = scmp.eq.s32.totalorder %s21, 1
      %p77 = por %p75, %p76
      %p78 = scmp.ne.s32.totalorder %s67, %s68
      %p79 = scmp.eq.s32.totalorder %s21, 0
      %p80 = por %p78, %p79
      %p81 = scmp.ne.s32.totalorder %s67, %s68
      %p82 = scmp.eq.s32.totalorder %s22, 1
      %p83 = por %p81, %p82
      %p85 = scmp.ne.s32.totalorder %s68, %s84
      %p86 = scmp.eq.s32.totalorder %s22, 0
      %p87 = por %p85, %p86
      %s88 = ssub.s32 %s23, %s35
      %p89 = scmp.eq.s32.totalorder %s88, 0
      %s91 = sadd.s32 %s90, 1
      %s92 = scalar_select %p89, %s90, %s91
      %p95 = pneg %p89
      %p96 = scmp.eq.s32.totalorder %s16, 1
      %p97 = por %p95, %p96
      %p98 = scmp.ne.s32.totalorder %s90, %s93
      %p99 = scmp.eq.s32.totalorder %s16, 0
      %p100 = por %p98, %p99
      %p101 = scmp.ne.s32.totalorder %s90, %s93
      %p102 = scmp.eq.s32.totalorder %s21, 1
      %p103 = por %p101, %p102
      %p104 = scmp.ne.s32.totalorder %s93, %s94
      %p105 = scmp.eq.s32.totalorder %s21, 0
      %p106 = por %p104, %p105
      %p107 = scmp.ne.s32.totalorder %s93, %s94
      %p108 = scmp.eq.s32.totalorder %s22, 1
      %p109 = por %p107, %p108
      %p111 = scmp.ne.s32.totalorder %s94, %s110
      %p112 = scmp.eq.s32.totalorder %s22, 0
      %p113 = por %p111, %p112
      %s114 = ssub.s32 %s24, %s31
      %s115 = ssub.s32 %s23, %s35
      %s116 = sor.u32 %s114, %s115
      %p117 = scmp.eq.s32.totalorder %s116, 0
      %s119 = sadd.s32 %s118, 1
      %s120 = scalar_select %p117, %s118, %s119
      %p123 = pneg %p117
      %p124 = scmp.eq.s32.totalorder %s16, 1
      %p125 = por %p123, %p124
      %p126 = scmp.ne.s32.totalorder %s118, %s121
      %p127 = scmp.eq.s32.totalorder %s16, 0
      %p128 = por %p126, %p127
      %p129 = scmp.ne.s32.totalorder %s118, %s121
      %p130 = scmp.eq.s32.totalorder %s21, 1
      %p131 = por %p129, %p130
      %p132 = scmp.ne.s32.totalorder %s121, %s122
      %p133 = scmp.eq.s32.totalorder %s21, 0
      %p134 = por %p132, %p133
      %p135 = scmp.ne.s32.totalorder %s121, %s122
      %p136 = scmp.eq.s32.totalorder %s22, 1
      %p137 = por %p135, %p136
      %p139 = scmp.ne.s32.totalorder %s122, %s138
      %p140 = scmp.eq.s32.totalorder %s22, 0
      %p141 = por %p139, %p140
      %p142 = scmp.le.s32.totalorder 1, %s16
      %p143 = scmp.lt.s32.totalorder %s16, 3
      %p144 = pnand %p142, %p143
      %p145 = pneg %p144
      // Predicated region
      $region9: #{tpu_custom_call.1} parent=5 // pred_check
        _
      $region10: #{tpu_custom_call.1} parent=5 // pred_check_branch
        %147 = sbr.rel (%p144) target = $region12
      $region11: #{tpu_custom_call.1} parent=5 // pred_region
        %s148 = ssub.s32 %s16, 1
        // Predicated region
        $region13: #{tpu_custom_call.1} parent=11 // pred_check
          %p149 = pneg %p80
        $region14: #{tpu_custom_call.1} parent=11 // pred_check_branch
          %151 = sbr.rel (%p149) target = $region16
        $region15: #{tpu_custom_call.1} parent=11 // pred_region
          %s152 = smul.u32 2, %s25
          %s154 = ssub.s32 2048, 2048
          %155 = vsyncadd [#allocation6], %s154
          %s156 = smul.addr %s152, 64
          %s157 = scalar_lea.hbm %s1, %s156
          %s158 = sshll.u32 [#allocation5], 4
          %s159 = int_to_ptr.vmem [resolvable:$true] %s158
          %164 = dma.hbm_to_vmem [thread:$0]  %s157, 2048, %s159, [#allocation6], 128, 128, 8
        $region16: #{tpu_custom_call.1} parent=11 // pred_fallthru
          _
        // Predicated region
        $region17: #{tpu_custom_call.1} parent=11 // pred_check
          %p165 = pneg %p106
        $region18: #{tpu_custom_call.1} parent=11 // pred_check_branch
          %167 = sbr.rel (%p165) target = $region20
        $region19: #{tpu_custom_call.1} parent=11 // pred_region
          %s168 = smul.u32 2, %s25
          %p169 = scmp.lt.s32.totalorder %s168, 1
          %s170 = scalar_select %p169, %s168, 1
          %s171 = scalar_lea.vmem %s2, %s170
          %s172 = smul.u32 2, %s25
        $region20: #{tpu_custom_call.1} parent=11 // pred_fallthru
          _
      $region12: #{tpu_custom_call.1} parent=5 // pred_fallthru
        _
      %p173 = scmp.lt.s32.totalorder %s16, 2
      // Predicated region
      $region21: #{tpu_custom_call.1} parent=5 // pred_check
        %p174 = pneg %p173
      $region22: #{tpu_custom_call.1} parent=5 // pred_check_branch
        %176 = sbr.rel (%p174) target = $region24
      $region23: #{tpu_custom_call.1} parent=5 // pred_region
        // Predicated region
        $region25: #{tpu_custom_call.1} parent=23 // pred_check
          %p177 = pneg %p48
        $region26: #{tpu_custom_call.1} parent=23 // pred_check_branch
          %179 = sbr.rel (%p177) target = $region28
        $region27: #{tpu_custom_call.1} parent=23 // pred_region
          %s180 = sand.u32 %s38, 1
          %s181 = scalar_lea.sflag [#allocation3], %s180
          %s182 = sand.u32 %s38, 1
          %s183 = smul.addr %s182, 8
          %s184 = scalar_lea.vmem [#allocation2], %s183
          %s186 = ssub.s32 128, 128
          %187 = vsyncadd %s181, %s186
          %s188 = smul.addr %s24, 128
          %s189 = scalar_lea.hbm %s0, %s188
          %s191 = sshll.u32 %s184, 4
          %s192 = int_to_ptr.vmem [resolvable:$true] %s191
          %194 = dma.hbm_to_vmem [thread:$0]  %s189, 128, %s192, %s181
        $region28: #{tpu_custom_call.1} parent=23 // pred_fallthru
          _
      $region24: #{tpu_custom_call.1} parent=5 // pred_fallthru
        _
      %p195 = scmp.le.s32.totalorder 1, %s16
      %p196 = scmp.lt.s32.totalorder %s16, 3
      %p197 = pnand %p195, %p196
      %p198 = pneg %p197
      // Predicated region
      $region29: #{tpu_custom_call.1} parent=5 // pred_check
        _
      $region30: #{tpu_custom_call.1} parent=5 // pred_check_branch
        %200 = sbr.rel (%p197) target = $region32
      $region31: #{tpu_custom_call.1} parent=5 // pred_region
        %s201 = ssub.s32 %s16, 1
        %s202 = sand.u32 %s41, 1
        %s203 = scalar_lea.sflag [#allocation3], %s202
        %s204 = sand.u32 %s41, 1
        %s205 = smul.addr %s204, 8
        %s206 = scalar_lea.vmem [#allocation2], %s205
        // Predicated region
        $region33: #{tpu_custom_call.1} parent=31 // pred_check
          %p207 = pneg %p54
        $region34: #{tpu_custom_call.1} parent=31 // pred_check_branch
          %209 = sbr.rel (%p207) target = $region36
        $region35: #{tpu_custom_call.1} parent=31 // pred_region
          %210 = dma.done %s203, 128
        $region36: #{tpu_custom_call.1} parent=31 // pred_fallthru
          _
        // Predicated region
        $region37: #{tpu_custom_call.1} parent=31 // pred_check
          %p211 = pneg %p80
        $region38: #{tpu_custom_call.1} parent=31 // pred_check_branch
          %213 = sbr.rel (%p211) target = $region40
        $region39: #{tpu_custom_call.1} parent=31 // pred_region
          %214 = dma.done [#allocation6], 2048
        $region40: #{tpu_custom_call.1} parent=31 // pred_fallthru
          _
        %s215 = sand.u32 %s41, 1
        %s216 = scalar_lea.sflag [#allocation3], %s215
        %s217 = sand.u32 %s41, 1
        %s218 = smul.addr %s217, 8
        %s219 = scalar_lea.vmem [#allocation2], %s218
        %p220 = pneg %p54
        %p221 = pneg %p51
        %p222 = pneg %p80
        %p223 = pneg %p77
        %s224 = smul.u32 2, %s25
        %p225 = scmp.lt.s32.totalorder %s224, 1
        %s226 = scalar_select %p225, %s224, 1
        %s227 = scalar_lea.vmem %s2, %s226
        %p228 = pneg %p106
        %p229 = pneg %p103
        %p230 = pneg %p134
        %p231 = pneg %p131
        %s232 = sand.u32 %s121, 1
        %s233 = scalar_lea.sflag [#allocation4], %s232
        %s234 = sand.u32 %s121, 1
        %s235 = smul.addr %s234, 16
        %s236 = scalar_lea.vmem [#allocation7], %s235
        %s237 = smul.u32 2, %s25
        %s238 = smul.u32 2, %s25
        %p239 = scmp.lt.s32.totalorder %s238, 1
        %s240 = scalar_select %p239, %s238, 1
        %s241 = scalar_lea.vmem %s2, %s240
        %s242 = smul.u32 2, %s25
        %s243 = smul.u32 2, %s25
        %v245 = vld [vmem:[%s206] sm:$0xff]
        %246 = vadd.xlane.f32.xlu0 %v245
        %v247 = vpop.xlane.xlu0 %246
        %v248 = vrcp.pop 128.0
        %v249 = vmul.f32 %v247, %v248
        %v250 = vsub.f32 %v245, %v249
        %v251 = vmul.f32 %v250, %v250
        %252 = vadd.xlane.f32.xlu0 %v251
        %v253 = vpop.xlane.xlu0 %252
        %v254 = vmul.f32 %v253, %v248
        %v255 = vadd.f32 %v254, 1e-05
        %v256 = vrsqrt.pop %v255
        %v257 = vmul.f32 %v250, %v256
        %v258 = vpack.c.bf16 %v257, %v257
        %v259 = vld [vmem:[#allocation5] sm:$0xff]
        %v260 = vld [vmem:[#allocation5 + $0x8] sm:$0xff]
        %v261 = vld [vmem:[#allocation5 + $0x10] sm:$0xff]
        %v262 = vld [vmem:[#allocation5 + $0x18] sm:$0xff]
        %v263 = vld [vmem:[#allocation5 + $0x20] sm:$0xff]
        %v264 = vld [vmem:[#allocation5 + $0x28] sm:$0xff]
        %v265 = vld [vmem:[#allocation5 + $0x30] sm:$0xff]
        %v266 = vld [vmem:[#allocation5 + $0x38] sm:$0xff]
        %v267 = vld [vmem:[#allocation5 + $0x40] sm:$0xff]
        %v268 = vld [vmem:[#allocation5 + $0x48] sm:$0xff]
        %v269 = vld [vmem:[#allocation5 + $0x50] sm:$0xff]
        %v270 = vld [vmem:[#allocation5 + $0x58] sm:$0xff]
        %v271 = vld [vmem:[#allocation5 + $0x60] sm:$0xff]
        %v272 = vld [vmem:[#allocation5 + $0x68] sm:$0xff]
        %v273 = vld [vmem:[#allocation5 + $0x70] sm:$0xff]
        %v274 = vld [vmem:[#allocation5 + $0x78] sm:$0xff]
        %v275 = vld [vmem:[%s241] sm:$0x3]
        %v277 = vlaneseq
        %v278 = vshrl.u32 %v277, 7
        %v279 = vsub.s32 0, %v278
        %v280 = vrot.slane %v275, %v279
        %v281 = vlaneseq
        %v282 = vshrl.u32 %v281, 7
        %v283 = vsub.s32 1, %v282
        %v284 = vrot.slane %v275, %v283
        %v303 = vunpack.c.l.b16 %v259
        %v304 = vunpack.c.h.b16 %v259
        %v305 = vunpack.c.l.b16 %v260
        %v306 = vunpack.c.h.b16 %v260
        %v307 = vunpack.c.l.b16 %v261
        %v308 = vunpack.c.h.b16 %v261
        %v309 = vunpack.c.l.b16 %v262
        %v310 = vunpack.c.h.b16 %v262
        %v311 = vunpack.c.l.b16 %v263
        %v312 = vunpack.c.h.b16 %v263
        %v313 = vunpack.c.l.b16 %v264
        %v314 = vunpack.c.h.b16 %v264
        %v315 = vunpack.c.l.b16 %v265
        %v316 = vunpack.c.h.b16 %v265
        %v317 = vunpack.c.l.b16 %v266
        %v318 = vunpack.c.h.b16 %v266
        %v319 = vunpack.c.l.b16 %v267
        %v320 = vunpack.c.h.b16 %v267
        %v321 = vunpack.c.l.b16 %v268
        %v322 = vunpack.c.h.b16 %v268
        %v323 = vunpack.c.l.b16 %v269
        %v324 = vunpack.c.h.b16 %v269
        %v325 = vunpack.c.l.b16 %v270
        %v326 = vunpack.c.h.b16 %v270
        %v327 = vunpack.c.l.b16 %v271
        %v328 = vunpack.c.h.b16 %v271
        %v329 = vunpack.c.l.b16 %v272
        %v330 = vunpack.c.h.b16 %v272
        %v331 = vunpack.c.l.b16 %v273
        %v332 = vunpack.c.h.b16 %v273
        %v333 = vunpack.c.l.b16 %v274
        %v334 = vunpack.c.h.b16 %v274
        %v335 = vpack.c.b16 %v305, %v303
        %v336 = vpack.c.b16 %v306, %v304
        %v337 = vpack.c.b16 %v309, %v307
        %v338 = vpack.c.b16 %v310, %v308
        %v339 = vpack.c.b16 %v313, %v311
        %v340 = vpack.c.b16 %v314, %v312
        %v341 = vpack.c.b16 %v317, %v315
        %v342 = vpack.c.b16 %v318, %v316
        %v343 = vpack.c.b16 %v321, %v319
        %v344 = vpack.c.b16 %v322, %v320
        %v345 = vpack.c.b16 %v325, %v323
        %v346 = vpack.c.b16 %v326, %v324
        %v347 = vpack.c.b16 %v329, %v327
        %v348 = vpack.c.b16 %v330, %v328
        %v349 = vpack.c.b16 %v333, %v331
        %v350 = vpack.c.b16 %v334, %v332
        %367 = vmatprep.subr.bf16.mxu0 %v336
        %368 = vmatpush1.bf16.msra.mxu0 %v335
        %369 = vmatprep.subr.bf16.mxu0 %v338
        %370 = vmatpush1.bf16.msra.mxu0 %v337
        %371 = vmatprep.subr.bf16.mxu0 %v340
        %372 = vmatpush1.bf16.msra.mxu0 %v339
        %373 = vmatprep.subr.bf16.mxu0 %v342
        %374 = vmatpush1.bf16.msra.mxu0 %v341
        %375 = vmatprep.subr.bf16.mxu0 %v344
        %376 = vmatpush1.bf16.msra.mxu0 %v343
        %377 = vmatprep.subr.bf16.mxu0 %v346
        %378 = vmatpush1.bf16.msra.mxu0 %v345
        %379 = vmatprep.subr.bf16.mxu0 %v348
        %380 = vmatpush1.bf16.msra.mxu0 %v347
        %381 = vmatprep.subr.bf16.mxu0 %v350
        %382 = vmatpush1.bf16.msra.mxu0 %v349
        %383 = vmatprep.subr.bf16.mxu0 0
        %384 = vmatpush1.bf16.msra.mxu0 0
        %385 = vmatprep.subr.bf16.mxu0 0
        %386 = vmatpush1.bf16.msra.mxu0 0
        %387 = vmatprep.subr.bf16.mxu0 0
        %388 = vmatpush1.bf16.msra.mxu0 0
        %389 = vmatprep.subr.bf16.mxu0 0
        %390 = vmatpush1.bf16.msra.mxu0 0
        %391 = vmatprep.subr.bf16.mxu0 0
        %392 = vmatpush1.bf16.msra.mxu0 0
        %393 = vmatprep.subr.bf16.mxu0 0
        %394 = vmatpush1.bf16.msra.mxu0 0
        %395 = vmatprep.subr.bf16.mxu0 0
        %396 = vmatpush1.bf16.msra.mxu0 0
        %397 = vmatprep.subr.bf16.mxu0 0
        %398 = vmatpush1.bf16.msra.mxu0 0
        %399 = vmatprep.mubr.bf16.mxu0 0
        %400 = vmatmul.mubr.bf16.gmra.mrb[0].mxu0 %v258
        %v401 = vpop.f32.mrb[0].mxu0
        %v402 = vadd.f32 %v280, %v401
        %v403 = vpop.f32.mrb[0].mxu0
        %v404 = vadd.f32 %v284, %v403
        %v405 = vpop.f32.mrb[0].mxu0
        %v406 = vpop.f32.mrb[0].mxu0
        %407 = vdwg.mxu0
        %408 = vst [vmem:[%s236] sm:$0xff] %v402
        %409 = vst [vmem:[%s236 + $0x8] sm:$0xff] %v404
        %s410 = sand.u32 %s121, 1
        %s411 = scalar_lea.sflag [#allocation4], %s410
        %s412 = sand.u32 %s121, 1
        %s413 = smul.addr %s412, 16
        %s414 = scalar_lea.vmem [#allocation7], %s413
        // Predicated region
        $region41: #{tpu_custom_call.1} parent=31 // pred_check
          %p415 = pneg %p131
        $region42: #{tpu_custom_call.1} parent=31 // pred_check_branch
          %417 = sbr.rel (%p415) target = $region44
        $region43: #{tpu_custom_call.1} parent=31 // pred_region
          %s418 = smul.u32 2, %s25
          %s420 = ssub.s32 256, 256
          %421 = vsyncadd %s411, %s420
          %s422 = smul.addr %s26, 2
          %s423 = sadd.s32 %s418, %s422
          %s424 = smul.addr %s423, 128
          %s425 = scalar_lea.hbm %s3, %s424
          %s427 = sshll.u32 %s414, 4
          %s428 = int_to_ptr.vmem [resolvable:$true] %s427
          %430 = dma.vmem_to_hbm [thread:$0]  %s428, 256, %s425, %s411
        $region44: #{tpu_custom_call.1} parent=31 // pred_fallthru
          _
      $region32: #{tpu_custom_call.1} parent=5 // pred_fallthru
        _
      %p431 = scmp.le.s32.totalorder 2, %s16
      // Predicated region
      $region45: #{tpu_custom_call.1} parent=5 // pred_check
        %p432 = pneg %p431
      $region46: #{tpu_custom_call.1} parent=5 // pred_check_branch
        %434 = sbr.rel (%p432) target = $region48
      $region47: #{tpu_custom_call.1} parent=5 // pred_region
        %s435 = ssub.s32 %s16, 2
        // Predicated region
        $region49: #{tpu_custom_call.1} parent=47 // pred_check
          %p436 = pneg %p137
        $region50: #{tpu_custom_call.1} parent=47 // pred_check_branch
          %438 = sbr.rel (%p436) target = $region52
        $region51: #{tpu_custom_call.1} parent=47 // pred_region
          %s439 = sand.u32 %s122, 1
          %s440 = scalar_lea.sflag [#allocation4], %s439
          %s441 = sand.u32 %s122, 1
          %s442 = smul.addr %s441, 16
          %s443 = scalar_lea.vmem [#allocation7], %s442
          %444 = dma.done %s440, 256
        $region52: #{tpu_custom_call.1} parent=47 // pred_fallthru
          _
      $region48: #{tpu_custom_call.1} parent=5 // pred_fallthru
        _
    $region6: #{tpu_custom_call.1} parent=1 // loop_footer
      %s20 = sadd.s32 1, %s16
    $region7: #{tpu_custom_call.1} parent=1 // loop_footer_branch
      %15 = sbr.rel target = $region3
    $region8: #{tpu_custom_call.1} parent=1 // loop_exit
      _
    %445 = vsyncpa [#allocation3], 1
    %s446 = scalar_lea.sflag [#allocation3], 1
    %447 = vsyncpa %s446, 1
    %448 = vsyncpa [#allocation6], 1
    %449 = vsyncpa [#allocation4], 1
    %s450 = scalar_lea.sflag [#allocation4], 1
    %451 = vsyncpa %s450, 1

</llo_original>
